<compile_context>
chip_gen: v7x
topology: tpu7x:2x2x1
jax: 0.10.0
libtpu: 0.0.40
codegen_flags: <defaults>
</compile_context>

<pallas_src>
import functools

import jax
import jax.numpy as jnp
from jax import lax
from jax.experimental import pallas as pl
from jax.experimental.pallas import tpu as pltpu

EPS = 1e-5
LANE = 128


def _round_up(x, m):
    return (x + m - 1) // m * m


def _make_conv_stats_kernel(kh_size, kw_size, img_w, p_out):
    """Fused im2col conv (9 accumulated MXU matmuls) + per-image BN partial sums."""

    def kernel(x_ref, w_ref, mask_ref, o_ref, stats_ref):
        # x_ref:     [1, Cin, P_in]       bf16  (flattened, zero-padded image row)
        # w_ref:     [KH*KW, Cout_p, Cin] bf16  (per-tap weight matrices)
        # mask_ref:  [1, P_out]           f32   (1.0 on valid output positions)
        # o_ref:     [1, Cout_p, P_out]   bf16  (conv output, NCHW-flat layout)
        # stats_ref: [1, Cout_p, 2]       f32   (col 0 = sum, col 1 = sum of squares)
        acc = None
        for t in range(kh_size * kw_size):
            off = (t // kw_size) * img_w + (t % kw_size)  # flat tap offset (static)
            x_tap = x_ref[0, :, pl.ds(off, p_out)]        # [Cin, P_out] bf16
            part = jnp.dot(w_ref[t], x_tap, preferred_element_type=jnp.float32)
            acc = part if acc is None else acc + part     # f32 accumulation

        # Zero the invalid (right/bottom edge + lane-pad) columns so the stored
        # intermediate is clean and the stats below are exact sums over valid pixels.
        acc = acc * mask_ref[...]

        o_ref[0] = acc.astype(o_ref.dtype)                # bf16 intermediate (review #2)
        s = jnp.sum(acc, axis=1, keepdims=True)           # [Cout_p, 1] f32
        ss = jnp.sum(acc * acc, axis=1, keepdims=True)    # [Cout_p, 1] f32
        stats_ref[0] = jnp.concatenate([s, ss], axis=1)   # [Cout_p, 2]

    return kernel


@jax.jit
def model_forward(x_nchw, w_oihw, gamma, beta):
    """Equivalent of Model.forward: Conv2d(k=3,s=1,p=0,bias=False) -> BatchNorm2d (training)."""
    n, cin, h, w = x_nchw.shape
    cout, _, kh_size, kw_size = w_oihw.shape
    ho, wo = h - kh_size + 1, w - kw_size + 1

    p = h * w                                   # flattened spatial size
    p_out = _round_up(p, LANE)                  # lane-dense output width
    off_max = (kh_size - 1) * w + (kw_size - 1)
    p_in = _round_up(p_out + off_max, LANE)     # input padded so every tap read is in-bounds
    cout_p = _round_up(cout, 8)                 # Cout on sublanes: pad to 8, not 128 (review #3)

    # ---- tiny wrapper-side prep (single fused XLA pass over x; no im2col blow-up) ----
    x_flat = jnp.pad(x_nchw.reshape(n, cin, p).astype(jnp.bfloat16),
                     ((0, 0), (0, 0), (0, p_in - p)))
    # per-tap weight matrices [KH*KW, Cout_p, Cin]
    w_taps = jnp.transpose(w_oihw, (2, 3, 0, 1)).reshape(kh_size * kw_size, cout, cin)
    w_taps = jnp.pad(w_taps, ((0, 0), (0, cout_p - cout), (0, 0))).astype(jnp.bfloat16)
    # validity mask over the flattened output positions
    q = jnp.arange(p_out, dtype=jnp.int32).reshape(1, p_out)
    mask = (((q % w) < wo) & ((q // w) < ho)).astype(jnp.float32)

    kernel = _make_conv_stats_kernel(kh_size, kw_size, w, p_out)

    conv, stats = pl.pallas_call(
        kernel,
        out_shape=(
            jax.ShapeDtypeStruct((n, cout_p, p_out), jnp.bfloat16),
            jax.ShapeDtypeStruct((n, cout_p, 2), jnp.float32),
        ),
        grid=(n,),
        in_specs=[
            pl.BlockSpec((1, cin, p_in), lambda i: (i, 0, 0)),
            pl.BlockSpec((kh_size * kw_size, cout_p, cin), lambda i: (0, 0, 0)),
            pl.BlockSpec((1, p_out), lambda i: (0, 0)),
        ],
        out_specs=(
            pl.BlockSpec((1, cout_p, p_out), lambda i: (i, 0, 0)),
            pl.BlockSpec((1, cout_p, 2), lambda i: (i, 0, 0)),
        ),
        compiler_params=pltpu.CompilerParams(
            dimension_semantics=("parallel",),          # batch axis -> both v7x TCs
            vmem_limit_bytes=32 * 1024 * 1024,
        ),
        cost_estimate=pl.CostEstimate(
            flops=2 * n * cout_p * p_out * kh_size * kw_size * cin,
            transcendentals=0,
            bytes_accessed=(n * cin * p_in * 2
                            + kh_size * kw_size * cout_p * cin * 2
                            + p_out * 4
                            + n * cout_p * p_out * 2
                            + n * cout_p * 2 * 4),
        ),
    )(x_flat, w_taps, mask)

    # ---- tiny reduction + BN folding (f32, review #10) ------------------------------
    m_true = n * ho * wo                                   # masked padding contributes 0
    ch_sum = jnp.sum(stats[:, :, 0], axis=0)               # [Cout_p]
    ch_sumsq = jnp.sum(stats[:, :, 1], axis=0)
    mean = ch_sum / m_true
    var = jnp.maximum(ch_sumsq / m_true - mean * mean, 0.0)  # biased batch variance
    inv_std = lax.rsqrt(var + EPS)
    gamma_p = jnp.pad(gamma.astype(jnp.float32), (0, cout_p - cout))
    beta_p = jnp.pad(beta.astype(jnp.float32), (0, cout_p - cout))
    scale = (gamma_p * inv_std).reshape(1, cout_p, 1)
    shift = (beta_p - mean * gamma_p * inv_std).reshape(1, cout_p, 1)

    # ---- epilogue: per-channel FMA + crop, fused by XLA into one pass (review #8) ---
    y = conv.astype(jnp.float32) * scale + shift            # [N, Cout_p, P_out]
    out = y[:, :cout, :p].reshape(n, cout, h, w)[:, :, :ho, :wo]
    return out


def reference(x_nchw, w_oihw, gamma, beta):
    """Pure-JAX f32 reference matching PyTorch Conv2d + BatchNorm2d (training mode)."""
    y = lax.conv_general_dilated(
        x_nchw, w_oihw, window_strides=(1, 1), padding="VALID",
        dimension_numbers=("NCHW", "OIHW", "NCHW"))
    mean = jnp.mean(y, axis=(0, 2, 3), keepdims=True)
    var = jnp.mean((y - mean) ** 2, axis=(0, 2, 3), keepdims=True)
    return ((y - mean) * lax.rsqrt(var + EPS)
            * gamma.reshape(1, -1, 1, 1) + beta.reshape(1, -1, 1, 1))


if __name__ == "__main__":
    N, CIN, COUT, H, W = 2, 4, 8, 16, 16

    key = jax.random.PRNGKey(0)
    kx, kw, kg, kb = jax.random.split(key, 4)
    x = jax.random.normal(kx, (N, CIN, H, W), jnp.float32)
    conv_w = jax.random.normal(kw, (COUT, CIN, 3, 3), jnp.float32) * 0.1
    bn_gamma = 1.0 + 0.1 * jax.random.normal(kg, (COUT,), jnp.float32)
    bn_beta = 0.1 * jax.random.normal(kb, (COUT,), jnp.float32)

    out = model_forward(x, conv_w, bn_gamma, bn_beta)
    jax.block_until_ready(out)

    ref = reference(x, conv_w, bn_gamma, bn_beta)
    assert out.shape == (N, COUT, H - 2, W - 2), out.shape
    # bf16 matmul operands + bf16 conv intermediate (f32 accumulation and f32 BN stats)
    # -> bf16-appropriate tolerance vs the f32 reference.
    max_err = float(jnp.max(jnp.abs(out - ref)))
    assert jnp.allclose(out, ref, atol=3e-2, rtol=3e-2), max_err

    print("KERNEL_OK")
</pallas_src>

<mosaic_0001>
module attributes {stable_mosaic.version = 11 : i64} {
  func.func @kernel(%arg0: i32, %arg1: memref<1x4x384xbf16, #tpu.memory_space<vmem>>, %arg2: memref<9x8x4xbf16, #tpu.memory_space<vmem>>, %arg3: memref<1x256xf32, #tpu.memory_space<vmem>>, %arg4: memref<1x8x256xbf16, #tpu.memory_space<vmem>>, %arg5: memref<1x8x2xf32, #tpu.memory_space<vmem>>) attributes {dimension_semantics = [#tpu.dimension_semantics<parallel>], iteration_bounds = array<i64: 2>, scalar_prefetch = 0 : i64, scratch_operands = 0 : i64, tpu.core_type = #tpu.core_type<tc>, window_params = [{transform_indices = @transform_0, window_bounds = array<i64: 1, 4, 384>}, {pipeline_mode = #tpu.pipeline_mode<synchronous>, transform_indices = @transform_1, window_bounds = array<i64: 9, 8, 4>}, {pipeline_mode = #tpu.pipeline_mode<synchronous>, transform_indices = @transform_2, window_bounds = array<i64: 1, 256>}, {transform_indices = @transform_3, window_bounds = array<i64: 1, 8, 256>}, {transform_indices = @transform_4, window_bounds = array<i64: 1, 8, 2>}]} {
    %c0 = arith.constant 0 : index
    %c0_0 = arith.constant 0 : index
    %c0_1 = arith.constant 0 : index
    %0 = vector.load %arg1[%c0, %c0_0, %c0_1] : memref<1x4x384xbf16, #tpu.memory_space<vmem>>, vector<1x4x256xbf16>
    %1 = vector.shape_cast %0 : vector<1x4x256xbf16> to vector<4x256xbf16>
    %c0_2 = arith.constant 0 : index
    %c0_3 = arith.constant 0 : index
    %c0_4 = arith.constant 0 : index
    %2 = vector.load %arg2[%c0_2, %c0_3, %c0_4] : memref<9x8x4xbf16, #tpu.memory_space<vmem>>, vector<1x8x4xbf16>
    %3 = vector.shape_cast %2 : vector<1x8x4xbf16> to vector<8x4xbf16>
    %cst = arith.constant dense<0.000000e+00> : vector<8x256xf32>
    %4 = tpu.matmul %3, %1, %cst {dimension_numbers = #tpu.dot_dimension_numbers<[1], [0], [0], [1], [0, 0, 1, 1], [], []>} : vector<8x4xbf16>, vector<4x256xbf16>, vector<8x256xf32> -> vector<8x256xf32>
    %c0_5 = arith.constant 0 : index
    %c0_6 = arith.constant 0 : index
    %c1 = arith.constant 1 : index
    %5 = vector.load %arg1[%c0_5, %c0_6, %c1] : memref<1x4x384xbf16, #tpu.memory_space<vmem>>, vector<1x4x256xbf16>
    %6 = vector.shape_cast %5 : vector<1x4x256xbf16> to vector<4x256xbf16>
    %c1_7 = arith.constant 1 : index
    %c0_8 = arith.constant 0 : index
    %c0_9 = arith.constant 0 : index
    %7 = vector.load %arg2[%c1_7, %c0_8, %c0_9] : memref<9x8x4xbf16, #tpu.memory_space<vmem>>, vector<1x8x4xbf16>
    %8 = vector.shape_cast %7 : vector<1x8x4xbf16> to vector<8x4xbf16>
    %cst_10 = arith.constant dense<0.000000e+00> : vector<8x256xf32>
    %9 = tpu.matmul %8, %6, %cst_10 {dimension_numbers = #tpu.dot_dimension_numbers<[1], [0], [0], [1], [0, 0, 1, 1], [], []>} : vector<8x4xbf16>, vector<4x256xbf16>, vector<8x256xf32> -> vector<8x256xf32>
    %10 = arith.addf %4, %9 : vector<8x256xf32>
    %c0_11 = arith.constant 0 : index
    %c0_12 = arith.constant 0 : index
    %c2 = arith.constant 2 : index
    %11 = vector.load %arg1[%c0_11, %c0_12, %c2] : memref<1x4x384xbf16, #tpu.memory_space<vmem>>, vector<1x4x256xbf16>
    %12 = vector.shape_cast %11 : vector<1x4x256xbf16> to vector<4x256xbf16>
    %c2_13 = arith.constant 2 : index
    %c0_14 = arith.constant 0 : index
    %c0_15 = arith.constant 0 : index
    %13 = vector.load %arg2[%c2_13, %c0_14, %c0_15] : memref<9x8x4xbf16, #tpu.memory_space<vmem>>, vector<1x8x4xbf16>
    %14 = vector.shape_cast %13 : vector<1x8x4xbf16> to vector<8x4xbf16>
    %cst_16 = arith.constant dense<0.000000e+00> : vector<8x256xf32>
    %15 = tpu.matmul %14, %12, %cst_16 {dimension_numbers = #tpu.dot_dimension_numbers<[1], [0], [0], [1], [0, 0, 1, 1], [], []>} : vector<8x4xbf16>, vector<4x256xbf16>, vector<8x256xf32> -> vector<8x256xf32>
    %16 = arith.addf %10, %15 : vector<8x256xf32>
    %c0_17 = arith.constant 0 : index
    %c0_18 = arith.constant 0 : index
    %c16 = arith.constant 16 : index
    %17 = vector.load %arg1[%c0_17, %c0_18, %c16] : memref<1x4x384xbf16, #tpu.memory_space<vmem>>, vector<1x4x256xbf16>
    %18 = vector.shape_cast %17 : vector<1x4x256xbf16> to vector<4x256xbf16>
    %c3 = arith.constant 3 : index
    %c0_19 = arith.constant 0 : index
    %c0_20 = arith.constant 0 : index
    %19 = vector.load %arg2[%c3, %c0_19, %c0_20] : memref<9x8x4xbf16, #tpu.memory_space<vmem>>, vector<1x8x4xbf16>
    %20 = vector.shape_cast %19 : vector<1x8x4xbf16> to vector<8x4xbf16>
    %cst_21 = arith.constant dense<0.000000e+00> : vector<8x256xf32>
    %21 = tpu.matmul %20, %18, %cst_21 {dimension_numbers = #tpu.dot_dimension_numbers<[1], [0], [0], [1], [0, 0, 1, 1], [], []>} : vector<8x4xbf16>, vector<4x256xbf16>, vector<8x256xf32> -> vector<8x256xf32>
    %22 = arith.addf %16, %21 : vector<8x256xf32>
    %c0_22 = arith.constant 0 : index
    %c0_23 = arith.constant 0 : index
    %c17 = arith.constant 17 : index
    %23 = vector.load %arg1[%c0_22, %c0_23, %c17] : memref<1x4x384xbf16, #tpu.memory_space<vmem>>, vector<1x4x256xbf16>
    %24 = vector.shape_cast %23 : vector<1x4x256xbf16> to vector<4x256xbf16>
    %c4 = arith.constant 4 : index
    %c0_24 = arith.constant 0 : index
    %c0_25 = arith.constant 0 : index
    %25 = vector.load %arg2[%c4, %c0_24, %c0_25] : memref<9x8x4xbf16, #tpu.memory_space<vmem>>, vector<1x8x4xbf16>
    %26 = vector.shape_cast %25 : vector<1x8x4xbf16> to vector<8x4xbf16>
    %cst_26 = arith.constant dense<0.000000e+00> : vector<8x256xf32>
    %27 = tpu.matmul %26, %24, %cst_26 {dimension_numbers = #tpu.dot_dimension_numbers<[1], [0], [0], [1], [0, 0, 1, 1], [], []>} : vector<8x4xbf16>, vector<4x256xbf16>, vector<8x256xf32> -> vector<8x256xf32>
    %28 = arith.addf %22, %27 : vector<8x256xf32>
    %c0_27 = arith.constant 0 : index
    %c0_28 = arith.constant 0 : index
    %c18 = arith.constant 18 : index
    %29 = vector.load %arg1[%c0_27, %c0_28, %c18] : memref<1x4x384xbf16, #tpu.memory_space<vmem>>, vector<1x4x256xbf16>
    %30 = vector.shape_cast %29 : vector<1x4x256xbf16> to vector<4x256xbf16>
    %c5 = arith.constant 5 : index
    %c0_29 = arith.constant 0 : index
    %c0_30 = arith.constant 0 : index
    %31 = vector.load %arg2[%c5, %c0_29, %c0_30] : memref<9x8x4xbf16, #tpu.memory_space<vmem>>, vector<1x8x4xbf16>
    %32 = vector.shape_cast %31 : vector<1x8x4xbf16> to vector<8x4xbf16>
    %cst_31 = arith.constant dense<0.000000e+00> : vector<8x256xf32>
    %33 = tpu.matmul %32, %30, %cst_31 {dimension_numbers = #tpu.dot_dimension_numbers<[1], [0], [0], [1], [0, 0, 1, 1], [], []>} : vector<8x4xbf16>, vector<4x256xbf16>, vector<8x256xf32> -> vector<8x256xf32>
    %34 = arith.addf %28, %33 : vector<8x256xf32>
    %c0_32 = arith.constant 0 : index
    %c0_33 = arith.constant 0 : index
    %c32 = arith.constant 32 : index
    %35 = vector.load %arg1[%c0_32, %c0_33, %c32] : memref<1x4x384xbf16, #tpu.memory_space<vmem>>, vector<1x4x256xbf16>
    %36 = vector.shape_cast %35 : vector<1x4x256xbf16> to vector<4x256xbf16>
    %c6 = arith.constant 6 : index
    %c0_34 = arith.constant 0 : index
    %c0_35 = arith.constant 0 : index
    %37 = vector.load %arg2[%c6, %c0_34, %c0_35] : memref<9x8x4xbf16, #tpu.memory_space<vmem>>, vector<1x8x4xbf16>
    %38 = vector.shape_cast %37 : vector<1x8x4xbf16> to vector<8x4xbf16>
    %cst_36 = arith.constant dense<0.000000e+00> : vector<8x256xf32>
    %39 = tpu.matmul %38, %36, %cst_36 {dimension_numbers = #tpu.dot_dimension_numbers<[1], [0], [0], [1], [0, 0, 1, 1], [], []>} : vector<8x4xbf16>, vector<4x256xbf16>, vector<8x256xf32> -> vector<8x256xf32>
    %40 = arith.addf %34, %39 : vector<8x256xf32>
    %c0_37 = arith.constant 0 : index
    %c0_38 = arith.constant 0 : index
    %c33 = arith.constant 33 : index
    %41 = vector.load %arg1[%c0_37, %c0_38, %c33] : memref<1x4x384xbf16, #tpu.memory_space<vmem>>, vector<1x4x256xbf16>
    %42 = vector.shape_cast %41 : vector<1x4x256xbf16> to vector<4x256xbf16>
    %c7 = arith.constant 7 : index
    %c0_39 = arith.constant 0 : index
    %c0_40 = arith.constant 0 : index
    %43 = vector.load %arg2[%c7, %c0_39, %c0_40] : memref<9x8x4xbf16, #tpu.memory_space<vmem>>, vector<1x8x4xbf16>
    %44 = vector.shape_cast %43 : vector<1x8x4xbf16> to vector<8x4xbf16>
    %cst_41 = arith.constant dense<0.000000e+00> : vector<8x256xf32>
    %45 = tpu.matmul %44, %42, %cst_41 {dimension_numbers = #tpu.dot_dimension_numbers<[1], [0], [0], [1], [0, 0, 1, 1], [], []>} : vector<8x4xbf16>, vector<4x256xbf16>, vector<8x256xf32> -> vector<8x256xf32>
    %46 = arith.addf %40, %45 : vector<8x256xf32>
    %c0_42 = arith.constant 0 : index
    %c0_43 = arith.constant 0 : index
    %c34 = arith.constant 34 : index
    %47 = vector.load %arg1[%c0_42, %c0_43, %c34] : memref<1x4x384xbf16, #tpu.memory_space<vmem>>, vector<1x4x256xbf16>
    %48 = vector.shape_cast %47 : vector<1x4x256xbf16> to vector<4x256xbf16>
    %c8 = arith.constant 8 : index
    %c0_44 = arith.constant 0 : index
    %c0_45 = arith.constant 0 : index
    %49 = vector.load %arg2[%c8, %c0_44, %c0_45] : memref<9x8x4xbf16, #tpu.memory_space<vmem>>, vector<1x8x4xbf16>
    %50 = vector.shape_cast %49 : vector<1x8x4xbf16> to vector<8x4xbf16>
    %cst_46 = arith.constant dense<0.000000e+00> : vector<8x256xf32>
    %51 = tpu.matmul %50, %48, %cst_46 {dimension_numbers = #tpu.dot_dimension_numbers<[1], [0], [0], [1], [0, 0, 1, 1], [], []>} : vector<8x4xbf16>, vector<4x256xbf16>, vector<8x256xf32> -> vector<8x256xf32>
    %52 = arith.addf %46, %51 : vector<8x256xf32>
    %c0_47 = arith.constant 0 : index
    %c0_48 = arith.constant 0 : index
    %53 = vector.load %arg3[%c0_47, %c0_48] : memref<1x256xf32, #tpu.memory_space<vmem>>, vector<1x256xf32>
    %54 = vector.broadcast %53 : vector<1x256xf32> to vector<8x256xf32>
    %55 = arith.mulf %52, %54 : vector<8x256xf32>
    %56 = arith.truncf %55 : vector<8x256xf32> to vector<8x256xbf16>
    %c0_49 = arith.constant 0 : index
    %c0_50 = arith.constant 0 : index
    %c0_51 = arith.constant 0 : index
    %57 = vector.load %arg4[%c0_49, %c0_50, %c0_51] : memref<1x8x256xbf16, #tpu.memory_space<vmem>>, vector<1x8x256xbf16>
    %58 = vector.shape_cast %57 : vector<1x8x256xbf16> to vector<8x256xbf16>
    %59 = vector.shape_cast %56 : vector<8x256xbf16> to vector<1x8x256xbf16>
    tpu.vector_store %arg4[%c0_49, %c0_50, %c0_51], %59 {strides = array<i32>} : memref<1x8x256xbf16, #tpu.memory_space<vmem>>, vector<1x8x256xbf16>,
    %cst_52 = arith.constant dense<0.000000e+00> : vector<8xf32>
    %60 = vector.multi_reduction <add>, %55, %cst_52 [1] : vector<8x256xf32> to vector<8xf32>
    %61 = vector.shape_cast %60 : vector<8xf32> to vector<8x1xf32>
    %62 = arith.mulf %55, %55 : vector<8x256xf32>
    %cst_53 = arith.constant dense<0.000000e+00> : vector<8xf32>
    %63 = vector.multi_reduction <add>, %62, %cst_53 [1] : vector<8x256xf32> to vector<8xf32>
    %64 = vector.shape_cast %63 : vector<8xf32> to vector<8x1xf32>
    %65 = tpu.concatenate %61, %64 in 1 : vector<8x1xf32>, vector<8x1xf32> -> vector<8x2xf32>
    %c0_54 = arith.constant 0 : index
    %c0_55 = arith.constant 0 : index
    %c0_56 = arith.constant 0 : index
    %66 = vector.load %arg5[%c0_54, %c0_55, %c0_56] : memref<1x8x2xf32, #tpu.memory_space<vmem>>, vector<1x8x2xf32>
    %67 = vector.shape_cast %66 : vector<1x8x2xf32> to vector<8x2xf32>
    %68 = vector.shape_cast %65 : vector<8x2xf32> to vector<1x8x2xf32>
    tpu.vector_store %arg5[%c0_54, %c0_55, %c0_56], %68 {strides = array<i32>} : memref<1x8x2xf32, #tpu.memory_space<vmem>>, vector<1x8x2xf32>,
    return
  }
  func.func @transform_0(%arg0: i32) -> (i32, i32, i32) {
    %c0_i32 = arith.constant 0 : i32
    %c0_i32_0 = arith.constant 0 : i32
    %c0_i32_1 = arith.constant 0 : i32
    return %arg0, %c0_i32, %c0_i32_0 : i32, i32, i32
  }
  func.func @transform_1(%arg0: i32) -> (i32, i32, i32) {
    %c0_i32 = arith.constant 0 : i32
    %c0_i32_0 = arith.constant 0 : i32
    %c0_i32_1 = arith.constant 0 : i32
    %c0_i32_2 = arith.constant 0 : i32
    return %c0_i32, %c0_i32_0, %c0_i32_1 : i32, i32, i32
  }
  func.func @transform_2(%arg0: i32) -> (i32, i32) {
    %c0_i32 = arith.constant 0 : i32
    %c0_i32_0 = arith.constant 0 : i32
    %c0_i32_1 = arith.constant 0 : i32
    return %c0_i32, %c0_i32_0 : i32, i32
  }
  func.func @transform_3(%arg0: i32) -> (i32, i32, i32) {
    %c0_i32 = arith.constant 0 : i32
    %c0_i32_0 = arith.constant 0 : i32
    %c0_i32_1 = arith.constant 0 : i32
    return %arg0, %c0_i32, %c0_i32_0 : i32, i32, i32
  }
  func.func @transform_4(%arg0: i32) -> (i32, i32, i32) {
    %c0_i32 = arith.constant 0 : i32
    %c0_i32_0 = arith.constant 0 : i32
    %c0_i32_1 = arith.constant 0 : i32
    return %arg0, %c0_i32, %c0_i32_0 : i32, i32, i32
  }
}

</mosaic_0001>

<llo_original>
// kernel: model_forward.1
$region0: #{model_forward.1}
  #allocation0 [shape = 'u32[]', space=smem, size = 0x4, offset = 0x4, fixed_abs, tag = 'smem constant byte address 0x4 - core index']
  #allocation1 [shape = 'u32[144,128]{1,0:T(1,128)}', space=vmem, size = 0x12000, scoped, tag = 'internal scratch']
  %s0 = inlined_call_operand.vmem [shape: bf16[2,4,384], index: 0, kind: input, shape index: {}]
  %s1 = inlined_call_operand.vmem [shape: bf16[9,8,4], index: 1, kind: input, shape index: {}]
  %s2 = inlined_call_operand.vmem [shape: f32[1,256], index: 2, kind: input, shape index: {}]
  %s3 = inlined_call_operand.vmem [shape: bf16[2,8,256], index: 3, kind: output, shape index: {0}]
  %s4 = inlined_call_operand.vmem [shape: f32[2,8,2], index: 4, kind: output, shape index: {1}]
  %5 = xla_tuple %s3, %s4
  %s6 = sld [smem:[#allocation0]]
  $region53: #{model_forward.1} parent=0
    _
  %s8 = ssub.s32 1, %s6
  %s9 = scalar_select 0, %s8, %s6
  loop: start=0, step=1, limit=4
  $region2: #{model_forward.1} parent=0 // loop_pre_header
    _
  $region3: #{model_forward.1} parent=0 // loop_header
    %s11 = sphi 0, %s15
    %p12 = scmp.ge.s32.totalorder %s11, 4
    %s21 = sphi 0, %s23
    %s24 = sphi 0, %s21
    %s25 = sphi 0, %s24
    %s41 = sphi 0, %s25
    %s45 = sphi 0, %s45
    %s47 = sphi 0, %s45
    %s48 = sphi 0, %s47
    %s62 = sphi 0, %s48
    %s66 = sphi 0, %s66
    %s68 = sphi 0, %s66
    %s69 = sphi 0, %s68
    %s83 = sphi 0, %s69
    %s89 = sphi 0, %s91
    %s92 = sphi 0, %s89
    %s93 = sphi 0, %s92
    %s109 = sphi 0, %s93
    %s115 = sphi 0, %s117
    %s118 = sphi 0, %s115
    %s119 = sphi 0, %s118
    %s135 = sphi 0, %s119
  $region4: #{model_forward.1} parent=0 // loop_header_branch
    %14 = sbr.rel (%p12) target = $region8
  $region5: #{model_forward.1} parent=0 // loop_body
    %s16 = ssub.s32 %s11, 1
    %s17 = ssub.s32 %s11, 2
    %s18 = sadd.s32 %s11, 1
    %s19 = ssub.s32 %s11, %s18
    %p20 = scmp.eq.s32.totalorder %s19, 0
    %s22 = sadd.s32 %s21, 1
    %s23 = scalar_select %p20, %s21, %s22
    %p26 = pneg %p20
    %p27 = scmp.eq.s32.totalorder %s11, 1
    %p28 = por %p26, %p27
    %p29 = scmp.ne.s32.totalorder %s21, %s24
    %p30 = scmp.eq.s32.totalorder %s11, 0
    %p31 = por %p29, %p30
    %p32 = scmp.ne.s32.totalorder %s21, %s24
    %p33 = scmp.eq.s32.totalorder %s16, 1
    %p34 = por %p32, %p33
    %p35 = scmp.ne.s32.totalorder %s24, %s25
    %p36 = scmp.eq.s32.totalorder %s16, 0
    %p37 = por %p35, %p36
    %p38 = scmp.ne.s32.totalorder %s24, %s25
    %p39 = scmp.eq.s32.totalorder %s17, 1
    %p40 = por %p38, %p39
    %p42 = scmp.ne.s32.totalorder %s25, %s41
    %p43 = scmp.eq.s32.totalorder %s17, 0
    %p44 = por %p42, %p43
    %s46 = sadd.s32 %s45, 1
    %p49 = scmp.eq.s32.totalorder %s11, 1
    %p50 = scmp.ne.s32.totalorder %s45, %s47
    %p51 = scmp.eq.s32.totalorder %s11, 0
    %p52 = por %p50, %p51
    %p53 = scmp.ne.s32.totalorder %s45, %s47
    %p54 = scmp.eq.s32.totalorder %s16, 1
    %p55 = por %p53, %p54
    %p56 = scmp.ne.s32.totalorder %s47, %s48
    %p57 = scmp.eq.s32.totalorder %s16, 0
    %p58 = por %p56, %p57
    %p59 = scmp.ne.s32.totalorder %s47, %s48
    %p60 = scmp.eq.s32.totalorder %s17, 1
    %p61 = por %p59, %p60
    %p63 = scmp.ne.s32.totalorder %s48, %s62
    %p64 = scmp.eq.s32.totalorder %s17, 0
    %p65 = por %p63, %p64
    %s67 = sadd.s32 %s66, 1
    %p70 = scmp.eq.s32.totalorder %s11, 1
    %p71 = scmp.ne.s32.totalorder %s66, %s68
    %p72 = scmp.eq.s32.totalorder %s11, 0
    %p73 = por %p71, %p72
    %p74 = scmp.ne.s32.totalorder %s66, %s68
    %p75 = scmp.eq.s32.totalorder %s16, 1
    %p76 = por %p74, %p75
    %p77 = scmp.ne.s32.totalorder %s68, %s69
    %p78 = scmp.eq.s32.totalorder %s16, 0
    %p79 = por %p77, %p78
    %p80 = scmp.ne.s32.totalorder %s68, %s69
    %p81 = scmp.eq.s32.totalorder %s17, 1
    %p82 = por %p80, %p81
    %p84 = scmp.ne.s32.totalorder %s69, %s83
    %p85 = scmp.eq.s32.totalorder %s17, 0
    %p86 = por %p84, %p85
    %s87 = ssub.s32 %s11, %s18
    %p88 = scmp.eq.s32.totalorder %s87, 0
    %s90 = sadd.s32 %s89, 1
    %s91 = scalar_select %p88, %s89, %s90
    %p94 = pneg %p88
    %p95 = scmp.eq.s32.totalorder %s11, 1
    %p96 = por %p94, %p95
    %p97 = scmp.ne.s32.totalorder %s89, %s92
    %p98 = scmp.eq.s32.totalorder %s11, 0
    %p99 = por %p97, %p98
    %p100 = scmp.ne.s32.totalorder %s89, %s92
    %p101 = scmp.eq.s32.totalorder %s16, 1
    %p102 = por %p100, %p101
    %p103 = scmp.ne.s32.totalorder %s92, %s93
    %p104 = scmp.eq.s32.totalorder %s16, 0
    %p105 = por %p103, %p104
    %p106 = scmp.ne.s32.totalorder %s92, %s93
    %p107 = scmp.eq.s32.totalorder %s17, 1
    %p108 = por %p106, %p107
    %p110 = scmp.ne.s32.totalorder %s93, %s109
    %p111 = scmp.eq.s32.totalorder %s17, 0
    %p112 = por %p110, %p111
    %s113 = ssub.s32 %s11, %s18
    %p114 = scmp.eq.s32.totalorder %s113, 0
    %s116 = sadd.s32 %s115, 1
    %s117 = scalar_select %p114, %s115, %s116
    %p120 = pneg %p114
    %p121 = scmp.eq.s32.totalorder %s11, 1
    %p122 = por %p120, %p121
    %p123 = scmp.ne.s32.totalorder %s115, %s118
    %p124 = scmp.eq.s32.totalorder %s11, 0
    %p125 = por %p123, %p124
    %p126 = scmp.ne.s32.totalorder %s115, %s118
    %p127 = scmp.eq.s32.totalorder %s16, 1
    %p128 = por %p126, %p127
    %p129 = scmp.ne.s32.totalorder %s118, %s119
    %p130 = scmp.eq.s32.totalorder %s16, 0
    %p131 = por %p129, %p130
    %p132 = scmp.ne.s32.totalorder %s118, %s119
    %p133 = scmp.eq.s32.totalorder %s17, 1
    %p134 = por %p132, %p133
    %p136 = scmp.ne.s32.totalorder %s119, %s135
    %p137 = scmp.eq.s32.totalorder %s17, 0
    %p138 = por %p136, %p137
    %p139 = scmp.le.s32.totalorder 1, %s11
    %p140 = scmp.lt.s32.totalorder %s11, 3
    %p141 = pnand %p139, %p140
    %p142 = pneg %p141
    // Predicated region
    $region9: #{model_forward.1} parent=5 // pred_check
      _
    $region10: #{model_forward.1} parent=5 // pred_check_branch
      %144 = sbr.rel (%p141) target = $region12
    $region11: #{model_forward.1} parent=5 // pred_region
      %s145 = ssub.s32 %s11, 1
      // Predicated region
      $region13: #{model_forward.1} parent=11 // pred_check
        %p146 = pneg %p58
      $region14: #{model_forward.1} parent=11 // pred_check_branch
        %148 = sbr.rel (%p146) target = $region16
      $region15: #{model_forward.1} parent=11 // pred_region
        _
      $region16: #{model_forward.1} parent=11 // pred_fallthru
        _
      // Predicated region
      $region17: #{model_forward.1} parent=11 // pred_check
        %p149 = pneg %p79
      $region18: #{model_forward.1} parent=11 // pred_check_branch
        %151 = sbr.rel (%p149) target = $region20
      $region19: #{model_forward.1} parent=11 // pred_region
        _
      $region20: #{model_forward.1} parent=11 // pred_fallthru
        _
    $region12: #{model_forward.1} parent=5 // pred_fallthru
      _
    %p152 = scmp.lt.s32.totalorder %s11, 2
    // Predicated region
    $region21: #{model_forward.1} parent=5 // pred_check
      %p153 = pneg %p152
    $region22: #{model_forward.1} parent=5 // pred_check_branch
      %155 = sbr.rel (%p153) target = $region24
    $region23: #{model_forward.1} parent=5 // pred_region
      // Predicated region
      $region25: #{model_forward.1} parent=23 // pred_check
        %p156 = pneg %p31
      $region26: #{model_forward.1} parent=23 // pred_check_branch
        %158 = sbr.rel (%p156) target = $region28
      $region27: #{model_forward.1} parent=23 // pred_region
        %p159 = scmp.lt.s32.totalorder %s11, 1
        %s160 = scalar_select %p159, %s11, 1
        %s161 = smul.addr %s160, 3
        %s162 = smul.addr %s161, 2
        %s163 = scalar_lea.vmem %s0, %s162
      $region28: #{model_forward.1} parent=23 // pred_fallthru
        _
    $region24: #{model_forward.1} parent=5 // pred_fallthru
      _
    %p164 = scmp.le.s32.totalorder 1, %s11
    %p165 = scmp.lt.s32.totalorder %s11, 3
    %p166 = pnand %p164, %p165
    %p167 = pneg %p166
    // Predicated region
    $region29: #{model_forward.1} parent=5 // pred_check
      _
    $region30: #{model_forward.1} parent=5 // pred_check_branch
      %169 = sbr.rel (%p166) target = $region32
    $region31: #{model_forward.1} parent=5 // pred_region
      %s170 = ssub.s32 %s11, 1
      %p171 = scmp.lt.s32.totalorder %s16, 1
      %s172 = scalar_select %p171, %s16, 1
      %s173 = smul.addr %s172, 3
      %s174 = smul.addr %s173, 2
      %s175 = scalar_lea.vmem %s0, %s174
      %p176 = pneg %p37
      %p177 = pneg %p34
      %p178 = pneg %p58
      %p179 = pneg %p55
      %p180 = pneg %p79
      %p181 = pneg %p76
      %p182 = pneg %p105
      %p183 = pneg %p102
      %p184 = scmp.lt.s32.totalorder %s16, 1
      %s185 = scalar_select %p184, %s16, 1
      %s186 = smul.addr %s185, 2
      %s187 = smul.addr %s186, 4
      %s188 = scalar_lea.vmem %s3, %s187
      %p189 = pneg %p131
      %p190 = pneg %p128
      %p191 = scmp.lt.s32.totalorder %s16, 1
      %s192 = scalar_select %p191, %s16, 1
      %s193 = smul.addr %s192, 8
      %s194 = scalar_lea.vmem %s4, %s193
      %p195 = scmp.lt.s32.totalorder %s16, 1
      %s196 = scalar_select %p195, %s16, 1
      %s197 = smul.addr %s196, 3
      %s198 = smul.addr %s197, 2
      %s199 = scalar_lea.vmem %s0, %s198
      %p200 = scmp.lt.s32.totalorder %s16, 1
      %s201 = scalar_select %p200, %s16, 1
      %s202 = smul.addr %s201, 2
      %s203 = smul.addr %s202, 4
      %s204 = scalar_lea.vmem %s3, %s203
      %p205 = scmp.lt.s32.totalorder %s16, 1
      %s206 = scalar_select %p205, %s16, 1
      %s207 = smul.addr %s206, 8
      %s208 = scalar_lea.vmem %s4, %s207
      %v210 = vld [vmem:[%s199] sm:$0xf]
      %v211 = vld [vmem:[%s1] sm:$0xf]
      %v212 = vld [vmem:[%s199] sm:$0x3f]
      %s213 = scalar_lea.vmem %s1, 4
      %v214 = vld [vmem:[%s213] sm:$0xf]
      %v216 = vcombine.high %v212, %v212
      %v218 = vunpack.c.l.s4 1983009808
      %v219 = vunpack.c.0.s8 %v218
      %v220 = vlaneseq
      %v221 = vshrl.u32 %v220, 7
      %v222 = vsub.s32 %v219, %v221
      %v223 = vrot.slane %v212, %v222
      %v225 = vunpack.c.l.s4 1983009808
      %v226 = vunpack.c.0.s8 %v225
      %v227 = vlaneseq
      %v228 = vshrl.u32 %v227, 7
      %v229 = vsub.s32 %v226, %v228
      %v230 = vrot.slane %v216, %v229
      %v231 = vcombine.high %v223, %v223
      %232 = vrot.lane.b32.xlu0 %v223, 127
      %v233 = vpop.permute.xlu0 %232
      %234 = vrot.lane.b32.xlu0 %v231, 127
      %v235 = vpop.permute.xlu0 %234
      %236 = vrot.lane.b32.xlu0 %v230, 127
      %v237 = vpop.permute.xlu0 %236
      %vm238 = vcmask 1039360
      %v239 = vsel %vm238, %v233, %v235
      %v240 = vsel %vm238, %v235, %v237
      %vm241 = vcmask 31744
      %v243 = vsel %vm241, %v214, 0
      %vm245 = vcmask 1041408
      %v247 = vsel %vm245, %v239, 0
      %v250 = vsel %vm245, %v240, 0
      %252 = vmatprep.subr.bf16.mxu0 %v250
      %253 = vmatpush1.bf16.msra.mxu0 %v247
      %254 = vmatprep.subr.bf16.mxu0 0
      %255 = vmatpush1.bf16.msra.mxu0 0
      %256 = vmatprep.subr.bf16.mxu0 0
      %257 = vmatpush1.bf16.msra.mxu0 0
      %258 = vmatprep.subr.bf16.mxu0 0
      %259 = vmatpush1.bf16.msra.mxu0 0
      %260 = vmatprep.subr.bf16.mxu0 0
      %261 = vmatpush1.bf16.msra.mxu0 0
      %262 = vmatprep.subr.bf16.mxu0 0
      %263 = vmatpush1.bf16.msra.mxu0 0
      %264 = vmatprep.subr.bf16.mxu0 0
      %265 = vmatpush1.bf16.msra.mxu0 0
      %266 = vmatprep.subr.bf16.mxu0 0
      %267 = vmatpush1.bf16.msra.mxu0 0
      %268 = vmatprep.subr.bf16.mxu0 0
      %269 = vmatpush1.bf16.msra.mxu0 0
      %270 = vmatprep.subr.bf16.mxu0 0
      %271 = vmatpush1.bf16.msra.mxu0 0
      %272 = vmatprep.subr.bf16.mxu0 0
      %273 = vmatpush1.bf16.msra.mxu0 0
      %274 = vmatprep.subr.bf16.mxu0 0
      %275 = vmatpush1.bf16.msra.mxu0 0
      %276 = vmatprep.subr.bf16.mxu0 0
      %277 = vmatpush1.bf16.msra.mxu0 0
      %278 = vmatprep.subr.bf16.mxu0 0
      %279 = vmatpush1.bf16.msra.mxu0 0
      %280 = vmatprep.subr.bf16.mxu0 0
      %281 = vmatpush1.bf16.msra.mxu0 0
      %282 = vmatprep.subr.bf16.mxu0 0
      %283 = vmatpush1.bf16.msra.mxu0 0
      %284 = vmatprep.mubr.bf16.mxu0 0
      %285 = vmatmul.mubr.bf16.gmra.mrb[0].mxu0 %v243
      %v286 = vpop.f32.mrb[0].mxu0
      %v287 = vadd.f32 0.0, %v286
      %v288 = vpop.f32.mrb[0].mxu0
      %v289 = vadd.f32 0.0, %v288
      %v290 = vpop.f32.mrb[0].mxu0
      %v291 = vpop.f32.mrb[0].mxu0
      %292 = vdwg.mxu0
      %v295 = vunpack.c.l.s4 1983009808
      %v296 = vunpack.c.0.s8 %v295
      %v297 = vlaneseq
      %v298 = vshrl.u32 %v297, 7
      %v299 = vsub.s32 %v296, %v298
      %v300 = vrot.slane %v210, %v299
      %v301 = vcombine.high %v300, %v300
      %v303 = vsel %vm241, %v211, 0
      %v306 = vsel %vm245, %v300, 0
      %v309 = vsel %vm245, %v301, 0
      %311 = vmatprep.subr.bf16.mxu0 %v309
      %312 = vmatpush1.bf16.msra.mxu0 %v306
      %313 = vmatprep.subr.bf16.mxu0 0
      %314 = vmatpush1.bf16.msra.mxu0 0
      %315 = vmatprep.subr.bf16.mxu0 0
      %316 = vmatpush1.bf16.msra.mxu0 0
      %317 = vmatprep.subr.bf16.mxu0 0
      %318 = vmatpush1.bf16.msra.mxu0 0
      %319 = vmatprep.subr.bf16.mxu0 0
      %320 = vmatpush1.bf16.msra.mxu0 0
      %321 = vmatprep.subr.bf16.mxu0 0
      %322 = vmatpush1.bf16.msra.mxu0 0
      %323 = vmatprep.subr.bf16.mxu0 0
      %324 = vmatpush1.bf16.msra.mxu0 0
      %325 = vmatprep.subr.bf16.mxu0 0
      %326 = vmatpush1.bf16.msra.mxu0 0
      %327 = vmatprep.subr.bf16.mxu0 0
      %328 = vmatpush1.bf16.msra.mxu0 0
      %329 = vmatprep.subr.bf16.mxu0 0
      %330 = vmatpush1.bf16.msra.mxu0 0
      %331 = vmatprep.subr.bf16.mxu0 0
      %332 = vmatpush1.bf16.msra.mxu0 0
      %333 = vmatprep.subr.bf16.mxu0 0
      %334 = vmatpush1.bf16.msra.mxu0 0
      %335 = vmatprep.subr.bf16.mxu0 0
      %336 = vmatpush1.bf16.msra.mxu0 0
      %337 = vmatprep.subr.bf16.mxu0 0
      %338 = vmatpush1.bf16.msra.mxu0 0
      %339 = vmatprep.subr.bf16.mxu0 0
      %340 = vmatpush1.bf16.msra.mxu0 0
      %341 = vmatprep.subr.bf16.mxu0 0
      %342 = vmatpush1.bf16.msra.mxu0 0
      %343 = vmatprep.mubr.bf16.mxu0 0
      %344 = vmatmul.mubr.bf16.gmra.mrb[0].mxu0 %v303
      %v345 = vpop.f32.mrb[0].mxu0
      %v346 = vadd.f32 %v287, %v345
      %v347 = vpop.f32.mrb[0].mxu0
      %v348 = vadd.f32 %v289, %v347
      %v349 = vpop.f32.mrb[0].mxu0
      %v350 = vpop.f32.mrb[0].mxu0
      %351 = vdwg.mxu0
      %v352 = vld [vmem:[%s199] sm:$0x3f]
      %s353 = scalar_lea.vmem %s1, 8
      %v354 = vld [vmem:[%s353] sm:$0xf]
      %v356 = vcombine.high %v352, %v352
      %v358 = vunpack.c.l.s4 1983009808
      %v359 = vunpack.c.0.s8 %v358
      %v360 = vlaneseq
      %v361 = vshrl.u32 %v360, 7
      %v362 = vsub.s32 %v359, %v361
      %v363 = vrot.slane %v352, %v362
      %v365 = vunpack.c.l.s4 1983009808
      %v366 = vunpack.c.0.s8 %v365
      %v367 = vlaneseq
      %v368 = vshrl.u32 %v367, 7
      %v369 = vsub.s32 %v366, %v368
      %v370 = vrot.slane %v356, %v369
      %v371 = vcombine.high %v363, %v363
      %372 = vrot.lane.b32.xlu0 %v363, 126
      %v373 = vpop.permute.xlu0 %372
      %374 = vrot.lane.b32.xlu0 %v371, 126
      %v375 = vpop.permute.xlu0 %374
      %376 = vrot.lane.b32.xlu0 %v370, 126
      %v377 = vpop.permute.xlu0 %376
      %vm378 = vcmask 1031168
      %v379 = vsel %vm378, %v373, %v375
      %v380 = vsel %vm378, %v375, %v377
      %v382 = vsel %vm241, %v354, 0
      %v385 = vsel %vm245, %v379, 0
      %v388 = vsel %vm245, %v380, 0
      %390 = vmatprep.subr.bf16.mxu0 %v388
      %391 = vmatpush1.bf16.msra.mxu0 %v385
      %392 = vmatprep.subr.bf16.mxu0 0
      %393 = vmatpush1.bf16.msra.mxu0 0
      %394 = vmatprep.subr.bf16.mxu0 0
      %395 = vmatpush1.bf16.msra.mxu0 0
      %396 = vmatprep.subr.bf16.mxu0 0
      %397 = vmatpush1.bf16.msra.mxu0 0
      %398 = vmatprep.subr.bf16.mxu0 0
      %399 = vmatpush1.bf16.msra.mxu0 0
      %400 = vmatprep.subr.bf16.mxu0 0
      %401 = vmatpush1.bf16.msra.mxu0 0
      %402 = vmatprep.subr.bf16.mxu0 0
      %403 = vmatpush1.bf16.msra.mxu0 0
      %404 = vmatprep.subr.bf16.mxu0 0
      %405 = vmatpush1.bf16.msra.mxu0 0
      %406 = vmatprep.subr.bf16.mxu0 0
      %407 = vmatpush1.bf16.msra.mxu0 0
      %408 = vmatprep.subr.bf16.mxu0 0
      %409 = vmatpush1.bf16.msra.mxu0 0
      %410 = vmatprep.subr.bf16.mxu0 0
      %411 = vmatpush1.bf16.msra.mxu0 0
      %412 = vmatprep.subr.bf16.mxu0 0
      %413 = vmatpush1.bf16.msra.mxu0 0
      %414 = vmatprep.subr.bf16.mxu0 0
      %415 = vmatpush1.bf16.msra.mxu0 0
      %416 = vmatprep.subr.bf16.mxu0 0
      %417 = vmatpush1.bf16.msra.mxu0 0
      %418 = vmatprep.subr.bf16.mxu0 0
      %419 = vmatpush1.bf16.msra.mxu0 0
      %420 = vmatprep.subr.bf16.mxu0 0
      %421 = vmatpush1.bf16.msra.mxu0 0
      %422 = vmatprep.mubr.bf16.mxu0 0
      %423 = vmatmul.mubr.bf16.gmra.mrb[0].mxu0 %v382
      %v424 = vpop.f32.mrb[0].mxu0
      %v425 = vadd.f32 0.0, %v424
      %v426 = vpop.f32.mrb[0].mxu0
      %v427 = vadd.f32 0.0, %v426
      %v428 = vpop.f32.mrb[0].mxu0
      %v429 = vpop.f32.mrb[0].mxu0
      %430 = vdwg.mxu0
      %v431 = vadd.f32 %v346, %v425
      %v432 = vadd.f32 %v348, %v427
      %v433 = vld [vmem:[%s199] sm:$0x3f]
      %s434 = scalar_lea.vmem %s1, 12
      %v435 = vld [vmem:[%s434] sm:$0xf]
      %v437 = vcombine.high %v433, %v433
      %v439 = vunpack.c.l.s4 1983009808
      %v440 = vunpack.c.0.s8 %v439
      %v441 = vlaneseq
      %v442 = vshrl.u32 %v441, 7
      %v443 = vsub.s32 %v440, %v442
      %v444 = vrot.slane %v433, %v443
      %v446 = vunpack.c.l.s4 1983009808
      %v447 = vunpack.c.0.s8 %v446
      %v448 = vlaneseq
      %v449 = vshrl.u32 %v448, 7
      %v450 = vsub.s32 %v447, %v449
      %v451 = vrot.slane %v437, %v450
      %v452 = vcombine.high %v444, %v444
      %453 = vrot.lane.b32.xlu0 %v444, 112
      %v454 = vpop.permute.xlu0 %453
      %455 = vrot.lane.b32.xlu0 %v452, 112
      %v456 = vpop.permute.xlu0 %455
      %457 = vrot.lane.b32.xlu0 %v451, 112
      %v458 = vpop.permute.xlu0 %457
      %vm459 = vcmask 916480
      %v460 = vsel %vm459, %v454, %v456
      %v461 = vsel %vm459, %v456, %v458
      %v463 = vsel %vm241, %v435, 0
      %v466 = vsel %vm245, %v460, 0
      %v469 = vsel %vm245, %v461, 0
      %471 = vmatprep.subr.bf16.mxu0 %v469
      %472 = vmatpush1.bf16.msra.mxu0 %v466
      %473 = vmatprep.subr.bf16.mxu0 0
      %474 = vmatpush1.bf16.msra.mxu0 0
      %475 = vmatprep.subr.bf16.mxu0 0
      %476 = vmatpush1.bf16.msra.mxu0 0
      %477 = vmatprep.subr.bf16.mxu0 0
      %478 = vmatpush1.bf16.msra.mxu0 0
      %479 = vmatprep.subr.bf16.mxu0 0
      %480 = vmatpush1.bf16.msra.mxu0 0
      %481 = vmatprep.subr.bf16.mxu0 0
      %482 = vmatpush1.bf16.msra.mxu0 0
      %483 = vmatprep.subr.bf16.mxu0 0
      %484 = vmatpush1.bf16.msra.mxu0 0
      %485 = vmatprep.subr.bf16.mxu0 0
      %486 = vmatpush1.bf16.msra.mxu0 0
      %487 = vmatprep.subr.bf16.mxu0 0
      %488 = vmatpush1.bf16.msra.mxu0 0
      %489 = vmatprep.subr.bf16.mxu0 0
      %490 = vmatpush1.bf16.msra.mxu0 0
      %491 = vmatprep.subr.bf16.mxu0 0
      %492 = vmatpush1.bf16.msra.mxu0 0
      %493 = vmatprep.subr.bf16.mxu0 0
      %494 = vmatpush1.bf16.msra.mxu0 0
      %495 = vmatprep.subr.bf16.mxu0 0
      %496 = vmatpush1.bf16.msra.mxu0 0
      %497 = vmatprep.subr.bf16.mxu0 0
      %498 = vmatpush1.bf16.msra.mxu0 0
      %499 = vmatprep.subr.bf16.mxu0 0
      %500 = vmatpush1.bf16.msra.mxu0 0
      %501 = vmatprep.subr.bf16.mxu0 0
      %502 = vmatpush1.bf16.msra.mxu0 0
      %503 = vmatprep.mubr.bf16.mxu0 0
      %504 = vmatmul.mubr.bf16.gmra.mrb[0].mxu0 %v463
      %v505 = vpop.f32.mrb[0].mxu0
      %v506 = vadd.f32 0.0, %v505
      %v507 = vpop.f32.mrb[0].mxu0
      %v508 = vadd.f32 0.0, %v507
      %v509 = vpop.f32.mrb[0].mxu0
      %v510 = vpop.f32.mrb[0].mxu0
      %511 = vdwg.mxu0
      %v512 = vadd.f32 %v431, %v506
      %v513 = vadd.f32 %v432, %v508
      %v514 = vld [vmem:[%s199] sm:$0x3f]
      %s515 = scalar_lea.vmem %s1, 16
      %v516 = vld [vmem:[%s515] sm:$0xf]
      %v518 = vcombine.high %v514, %v514
      %v520 = vunpack.c.l.s4 1983009808
      %v521 = vunpack.c.0.s8 %v520
      %v522 = vlaneseq
      %v523 = vshrl.u32 %v522, 7
      %v524 = vsub.s32 %v521, %v523
      %v525 = vrot.slane %v514, %v524
      %v527 = vunpack.c.l.s4 1983009808
      %v528 = vunpack.c.0.s8 %v527
      %v529 = vlaneseq
      %v530 = vshrl.u32 %v529, 7
      %v531 = vsub.s32 %v528, %v530
      %v532 = vrot.slane %v518, %v531
      %v533 = vcombine.high %v525, %v525
      %534 = vrot.lane.b32.xlu0 %v525, 111
      %v535 = vpop.permute.xlu0 %534
      %536 = vrot.lane.b32.xlu0 %v533, 111
      %v537 = vpop.permute.xlu0 %536
      %538 = vrot.lane.b32.xlu0 %v532, 111
      %v539 = vpop.permute.xlu0 %538
      %vm540 = vcmask 908288
      %v541 = vsel %vm540, %v535, %v537
      %v542 = vsel %vm540, %v537, %v539
      %v544 = vsel %vm241, %v516, 0
      %v547 = vsel %vm245, %v541, 0
      %v550 = vsel %vm245, %v542, 0
      %552 = vmatprep.subr.bf16.mxu0 %v550
      %553 = vmatpush1.bf16.msra.mxu0 %v547
      %554 = vmatprep.subr.bf16.mxu0 0
      %555 = vmatpush1.bf16.msra.mxu0 0
      %556 = vmatprep.subr.bf16.mxu0 0
      %557 = vmatpush1.bf16.msra.mxu0 0
      %558 = vmatprep.subr.bf16.mxu0 0
      %559 = vmatpush1.bf16.msra.mxu0 0
      %560 = vmatprep.subr.bf16.mxu0 0
      %561 = vmatpush1.bf16.msra.mxu0 0
      %562 = vmatprep.subr.bf16.mxu0 0
      %563 = vmatpush1.bf16.msra.mxu0 0
      %564 = vmatprep.subr.bf16.mxu0 0
      %565 = vmatpush1.bf16.msra.mxu0 0
      %566 = vmatprep.subr.bf16.mxu0 0
      %567 = vmatpush1.bf16.msra.mxu0 0
      %568 = vmatprep.subr.bf16.mxu0 0
      %569 = vmatpush1.bf16.msra.mxu0 0
      %570 = vmatprep.subr.bf16.mxu0 0
      %571 = vmatpush1.bf16.msra.mxu0 0
      %572 = vmatprep.subr.bf16.mxu0 0
      %573 = vmatpush1.bf16.msra.mxu0 0
      %574 = vmatprep.subr.bf16.mxu0 0
      %575 = vmatpush1.bf16.msra.mxu0 0
      %576 = vmatprep.subr.bf16.mxu0 0
      %577 = vmatpush1.bf16.msra.mxu0 0
      %578 = vmatprep.subr.bf16.mxu0 0
      %579 = vmatpush1.bf16.msra.mxu0 0
      %580 = vmatprep.subr.bf16.mxu0 0
      %581 = vmatpush1.bf16.msra.mxu0 0
      %582 = vmatprep.subr.bf16.mxu0 0
      %583 = vmatpush1.bf16.msra.mxu0 0
      %584 = vmatprep.mubr.bf16.mxu0 0
      %585 = vmatmul.mubr.bf16.gmra.mrb[0].mxu0 %v544
      %v586 = vpop.f32.mrb[0].mxu0
      %v587 = vadd.f32 0.0, %v586
      %v588 = vpop.f32.mrb[0].mxu0
      %v589 = vadd.f32 0.0, %v588
      %v590 = vpop.f32.mrb[0].mxu0
      %v591 = vpop.f32.mrb[0].mxu0
      %592 = vdwg.mxu0
      %v593 = vadd.f32 %v512, %v587
      %v594 = vadd.f32 %v513, %v589
      %v595 = vld [vmem:[%s199] sm:$0x3f]
      %s596 = scalar_lea.vmem %s1, 20
      %v597 = vld [vmem:[%s596] sm:$0xf]
      %v599 = vcombine.high %v595, %v595
      %v601 = vunpack.c.l.s4 1983009808
      %v602 = vunpack.c.0.s8 %v601
      %v603 = vlaneseq
      %v604 = vshrl.u32 %v603, 7
      %v605 = vsub.s32 %v602, %v604
      %v606 = vrot.slane %v595, %v605
      %v608 = vunpack.c.l.s4 1983009808
      %v609 = vunpack.c.0.s8 %v608
      %v610 = vlaneseq
      %v611 = vshrl.u32 %v610, 7
      %v612 = vsub.s32 %v609, %v611
      %v613 = vrot.slane %v599, %v612
      %v614 = vcombine.high %v606, %v606
      %615 = vrot.lane.b32.xlu0 %v606, 110
      %v616 = vpop.permute.xlu0 %615
      %617 = vrot.lane.b32.xlu0 %v614, 110
      %v618 = vpop.permute.xlu0 %617
      %619 = vrot.lane.b32.xlu0 %v613, 110
      %v620 = vpop.permute.xlu0 %619
      %vm621 = vcmask 900096
      %v622 = vsel %vm621, %v616, %v618
      %v623 = vsel %vm621, %v618, %v620
      %v625 = vsel %vm241, %v597, 0
      %v628 = vsel %vm245, %v622, 0
      %v631 = vsel %vm245, %v623, 0
      %633 = vmatprep.subr.bf16.mxu0 %v631
      %634 = vmatpush1.bf16.msra.mxu0 %v628
      %635 = vmatprep.subr.bf16.mxu0 0
      %636 = vmatpush1.bf16.msra.mxu0 0
      %637 = vmatprep.subr.bf16.mxu0 0
      %638 = vmatpush1.bf16.msra.mxu0 0
      %639 = vmatprep.subr.bf16.mxu0 0
      %640 = vmatpush1.bf16.msra.mxu0 0
      %641 = vmatprep.subr.bf16.mxu0 0
      %642 = vmatpush1.bf16.msra.mxu0 0
      %643 = vmatprep.subr.bf16.mxu0 0
      %644 = vmatpush1.bf16.msra.mxu0 0
      %645 = vmatprep.subr.bf16.mxu0 0
      %646 = vmatpush1.bf16.msra.mxu0 0
      %647 = vmatprep.subr.bf16.mxu0 0
      %648 = vmatpush1.bf16.msra.mxu0 0
      %649 = vmatprep.subr.bf16.mxu0 0
      %650 = vmatpush1.bf16.msra.mxu0 0
      %651 = vmatprep.subr.bf16.mxu0 0
      %652 = vmatpush1.bf16.msra.mxu0 0
      %653 = vmatprep.subr.bf16.mxu0 0
      %654 = vmatpush1.bf16.msra.mxu0 0
      %655 = vmatprep.subr.bf16.mxu0 0
      %656 = vmatpush1.bf16.msra.mxu0 0
      %657 = vmatprep.subr.bf16.mxu0 0
      %658 = vmatpush1.bf16.msra.mxu0 0
      %659 = vmatprep.subr.bf16.mxu0 0
      %660 = vmatpush1.bf16.msra.mxu0 0
      %661 = vmatprep.subr.bf16.mxu0 0
      %662 = vmatpush1.bf16.msra.mxu0 0
      %663 = vmatprep.subr.bf16.mxu0 0
      %664 = vmatpush1.bf16.msra.mxu0 0
      %665 = vmatprep.mubr.bf16.mxu0 0
      %666 = vmatmul.mubr.bf16.gmra.mrb[0].mxu0 %v625
      %v667 = vpop.f32.mrb[0].mxu0
      %v668 = vadd.f32 0.0, %v667
      %v669 = vpop.f32.mrb[0].mxu0
      %v670 = vadd.f32 0.0, %v669
      %v671 = vpop.f32.mrb[0].mxu0
      %v672 = vpop.f32.mrb[0].mxu0
      %673 = vdwg.mxu0
      %v674 = vadd.f32 %v593, %v668
      %v675 = vadd.f32 %v594, %v670
      %v676 = vld [vmem:[%s199] sm:$0x3f]
      %s677 = scalar_lea.vmem %s1, 24
      %v678 = vld [vmem:[%s677] sm:$0xf]
      %v680 = vcombine.high %v676, %v676
      %v682 = vunpack.c.l.s4 1983009808
      %v683 = vunpack.c.0.s8 %v682
      %v684 = vlaneseq
      %v685 = vshrl.u32 %v684, 7
      %v686 = vsub.s32 %v683, %v685
      %v687 = vrot.slane %v676, %v686
      %v689 = vunpack.c.l.s4 1983009808
      %v690 = vunpack.c.0.s8 %v689
      %v691 = vlaneseq
      %v692 = vshrl.u32 %v691, 7
      %v693 = vsub.s32 %v690, %v692
      %v694 = vrot.slane %v680, %v693
      %v695 = vcombine.high %v687, %v687
      %696 = vrot.lane.b32.xlu0 %v687, 96
      %v697 = vpop.permute.xlu0 %696
      %698 = vrot.lane.b32.xlu0 %v695, 96
      %v699 = vpop.permute.xlu0 %698
      %700 = vrot.lane.b32.xlu0 %v694, 96
      %v701 = vpop.permute.xlu0 %700
      %vm702 = vcmask 785408
      %v703 = vsel %vm702, %v697, %v699
      %v704 = vsel %vm702, %v699, %v701
      %v706 = vsel %vm241, %v678, 0
      %v709 = vsel %vm245, %v703, 0
      %v712 = vsel %vm245, %v704, 0
      %714 = vmatprep.subr.bf16.mxu0 %v712
      %715 = vmatpush1.bf16.msra.mxu0 %v709
      %716 = vmatprep.subr.bf16.mxu0 0
      %717 = vmatpush1.bf16.msra.mxu0 0
      %718 = vmatprep.subr.bf16.mxu0 0
      %719 = vmatpush1.bf16.msra.mxu0 0
      %720 = vmatprep.subr.bf16.mxu0 0
      %721 = vmatpush1.bf16.msra.mxu0 0
      %722 = vmatprep.subr.bf16.mxu0 0
      %723 = vmatpush1.bf16.msra.mxu0 0
      %724 = vmatprep.subr.bf16.mxu0 0
      %725 = vmatpush1.bf16.msra.mxu0 0
      %726 = vmatprep.subr.bf16.mxu0 0
      %727 = vmatpush1.bf16.msra.mxu0 0
      %728 = vmatprep.subr.bf16.mxu0 0
      %729 = vmatpush1.bf16.msra.mxu0 0
      %730 = vmatprep.subr.bf16.mxu0 0
      %731 = vmatpush1.bf16.msra.mxu0 0
      %732 = vmatprep.subr.bf16.mxu0 0
      %733 = vmatpush1.bf16.msra.mxu0 0
      %734 = vmatprep.subr.bf16.mxu0 0
      %735 = vmatpush1.bf16.msra.mxu0 0
      %736 = vmatprep.subr.bf16.mxu0 0
      %737 = vmatpush1.bf16.msra.mxu0 0
      %738 = vmatprep.subr.bf16.mxu0 0
      %739 = vmatpush1.bf16.msra.mxu0 0
      %740 = vmatprep.subr.bf16.mxu0 0
      %741 = vmatpush1.bf16.msra.mxu0 0
      %742 = vmatprep.subr.bf16.mxu0 0
      %743 = vmatpush1.bf16.msra.mxu0 0
      %744 = vmatprep.subr.bf16.mxu0 0
      %745 = vmatpush1.bf16.msra.mxu0 0
      %746 = vmatprep.mubr.bf16.mxu0 0
      %747 = vmatmul.mubr.bf16.gmra.mrb[0].mxu0 %v706
      %v748 = vpop.f32.mrb[0].mxu0
      %v749 = vadd.f32 0.0, %v748
      %v750 = vpop.f32.mrb[0].mxu0
      %v751 = vadd.f32 0.0, %v750
      %v752 = vpop.f32.mrb[0].mxu0
      %v753 = vpop.f32.mrb[0].mxu0
      %754 = vdwg.mxu0
      %v755 = vadd.f32 %v674, %v749
      %v756 = vadd.f32 %v675, %v751
      %v757 = vld [vmem:[%s199] sm:$0x3f]
      %s758 = scalar_lea.vmem %s1, 28
      %v759 = vld [vmem:[%s758] sm:$0xf]
      %v761 = vcombine.high %v757, %v757
      %v763 = vunpack.c.l.s4 1983009808
      %v764 = vunpack.c.0.s8 %v763
      %v765 = vlaneseq
      %v766 = vshrl.u32 %v765, 7
      %v767 = vsub.s32 %v764, %v766
      %v768 = vrot.slane %v757, %v767
      %v770 = vunpack.c.l.s4 1983009808
      %v771 = vunpack.c.0.s8 %v770
      %v772 = vlaneseq
      %v773 = vshrl.u32 %v772, 7
      %v774 = vsub.s32 %v771, %v773
      %v775 = vrot.slane %v761, %v774
      %v776 = vcombine.high %v768, %v768
      %777 = vrot.lane.b32.xlu0 %v768, 95
      %v778 = vpop.permute.xlu0 %777
      %779 = vrot.lane.b32.xlu0 %v776, 95
      %v780 = vpop.permute.xlu0 %779
      %781 = vrot.lane.b32.xlu0 %v775, 95
      %v782 = vpop.permute.xlu0 %781
      %vm783 = vcmask 777216
      %v784 = vsel %vm783, %v778, %v780
      %v785 = vsel %vm783, %v780, %v782
      %v787 = vsel %vm241, %v759, 0
      %v790 = vsel %vm245, %v784, 0
      %v793 = vsel %vm245, %v785, 0
      %795 = vmatprep.subr.bf16.mxu0 %v793
      %796 = vmatpush1.bf16.msra.mxu0 %v790
      %797 = vmatprep.subr.bf16.mxu0 0
      %798 = vmatpush1.bf16.msra.mxu0 0
      %799 = vmatprep.subr.bf16.mxu0 0
      %800 = vmatpush1.bf16.msra.mxu0 0
      %801 = vmatprep.subr.bf16.mxu0 0
      %802 = vmatpush1.bf16.msra.mxu0 0
      %803 = vmatprep.subr.bf16.mxu0 0
      %804 = vmatpush1.bf16.msra.mxu0 0
      %805 = vmatprep.subr.bf16.mxu0 0
      %806 = vmatpush1.bf16.msra.mxu0 0
      %807 = vmatprep.subr.bf16.mxu0 0
      %808 = vmatpush1.bf16.msra.mxu0 0
      %809 = vmatprep.subr.bf16.mxu0 0
      %810 = vmatpush1.bf16.msra.mxu0 0
      %811 = vmatprep.subr.bf16.mxu0 0
      %812 = vmatpush1.bf16.msra.mxu0 0
      %813 = vmatprep.subr.bf16.mxu0 0
      %814 = vmatpush1.bf16.msra.mxu0 0
      %815 = vmatprep.subr.bf16.mxu0 0
      %816 = vmatpush1.bf16.msra.mxu0 0
      %817 = vmatprep.subr.bf16.mxu0 0
      %818 = vmatpush1.bf16.msra.mxu0 0
      %819 = vmatprep.subr.bf16.mxu0 0
      %820 = vmatpush1.bf16.msra.mxu0 0
      %821 = vmatprep.subr.bf16.mxu0 0
      %822 = vmatpush1.bf16.msra.mxu0 0
      %823 = vmatprep.subr.bf16.mxu0 0
      %824 = vmatpush1.bf16.msra.mxu0 0
      %825 = vmatprep.subr.bf16.mxu0 0
      %826 = vmatpush1.bf16.msra.mxu0 0
      %827 = vmatprep.mubr.bf16.mxu0 0
      %828 = vmatmul.mubr.bf16.gmra.mrb[0].mxu0 %v787
      %v829 = vpop.f32.mrb[0].mxu0
      %v830 = vadd.f32 0.0, %v829
      %v831 = vpop.f32.mrb[0].mxu0
      %v832 = vadd.f32 0.0, %v831
      %v833 = vpop.f32.mrb[0].mxu0
      %v834 = vpop.f32.mrb[0].mxu0
      %835 = vdwg.mxu0
      %v836 = vadd.f32 %v755, %v830
      %v837 = vadd.f32 %v756, %v832
      %v838 = vld [vmem:[%s199] sm:$0x3f]
      %s839 = scalar_lea.vmem %s1, 32
      %v840 = vld [vmem:[%s839] sm:$0xf]
      %v842 = vcombine.high %v838, %v838
      %v844 = vunpack.c.l.s4 1983009808
      %v845 = vunpack.c.0.s8 %v844
      %v846 = vlaneseq
      %v847 = vshrl.u32 %v846, 7
      %v848 = vsub.s32 %v845, %v847
      %v849 = vrot.slane %v838, %v848
      %v851 = vunpack.c.l.s4 1983009808
      %v852 = vunpack.c.0.s8 %v851
      %v853 = vlaneseq
      %v854 = vshrl.u32 %v853, 7
      %v855 = vsub.s32 %v852, %v854
      %v856 = vrot.slane %v842, %v855
      %v857 = vcombine.high %v849, %v849
      %858 = vrot.lane.b32.xlu0 %v849, 94
      %v859 = vpop.permute.xlu0 %858
      %860 = vrot.lane.b32.xlu0 %v857, 94
      %v861 = vpop.permute.xlu0 %860
      %862 = vrot.lane.b32.xlu0 %v856, 94
      %v863 = vpop.permute.xlu0 %862
      %vm864 = vcmask 769024
      %v865 = vsel %vm864, %v859, %v861
      %v866 = vsel %vm864, %v861, %v863
      %v868 = vsel %vm241, %v840, 0
      %v871 = vsel %vm245, %v865, 0
      %v874 = vsel %vm245, %v866, 0
      %876 = vmatprep.subr.bf16.mxu0 %v874
      %877 = vmatpush1.bf16.msra.mxu0 %v871
      %878 = vmatprep.subr.bf16.mxu0 0
      %879 = vmatpush1.bf16.msra.mxu0 0
      %880 = vmatprep.subr.bf16.mxu0 0
      %881 = vmatpush1.bf16.msra.mxu0 0
      %882 = vmatprep.subr.bf16.mxu0 0
      %883 = vmatpush1.bf16.msra.mxu0 0
      %884 = vmatprep.subr.bf16.mxu0 0
      %885 = vmatpush1.bf16.msra.mxu0 0
      %886 = vmatprep.subr.bf16.mxu0 0
      %887 = vmatpush1.bf16.msra.mxu0 0
      %888 = vmatprep.subr.bf16.mxu0 0
      %889 = vmatpush1.bf16.msra.mxu0 0
      %890 = vmatprep.subr.bf16.mxu0 0
      %891 = vmatpush1.bf16.msra.mxu0 0
      %892 = vmatprep.subr.bf16.mxu0 0
      %893 = vmatpush1.bf16.msra.mxu0 0
      %894 = vmatprep.subr.bf16.mxu0 0
      %895 = vmatpush1.bf16.msra.mxu0 0
      %896 = vmatprep.subr.bf16.mxu0 0
      %897 = vmatpush1.bf16.msra.mxu0 0
      %898 = vmatprep.subr.bf16.mxu0 0
      %899 = vmatpush1.bf16.msra.mxu0 0
      %900 = vmatprep.subr.bf16.mxu0 0
      %901 = vmatpush1.bf16.msra.mxu0 0
      %902 = vmatprep.subr.bf16.mxu0 0
      %903 = vmatpush1.bf16.msra.mxu0 0
      %904 = vmatprep.subr.bf16.mxu0 0
      %905 = vmatpush1.bf16.msra.mxu0 0
      %906 = vmatprep.subr.bf16.mxu0 0
      %907 = vmatpush1.bf16.msra.mxu0 0
      %908 = vmatprep.mubr.bf16.mxu0 0
      %909 = vmatmul.mubr.bf16.gmra.mrb[0].mxu0 %v868
      %v910 = vpop.f32.mrb[0].mxu0
      %v911 = vadd.f32 0.0, %v910
      %v912 = vpop.f32.mrb[0].mxu0
      %v913 = vadd.f32 0.0, %v912
      %v914 = vpop.f32.mrb[0].mxu0
      %v915 = vpop.f32.mrb[0].mxu0
      %916 = vdwg.mxu0
      %v917 = vadd.f32 %v836, %v911
      %v918 = vadd.f32 %v837, %v913
      %v919 = vld [vmem:[%s2] sm:$0x3]
      %v921 = vlaneseq
      %v922 = vshrl.u32 %v921, 7
      %v923 = vsub.s32 0, %v922
      %v924 = vrot.slane %v919, %v923
      %v925 = vlaneseq
      %v926 = vshrl.u32 %v925, 7
      %v927 = vsub.s32 1, %v926
      %v928 = vrot.slane %v919, %v927
      %v931 = vmul.f32 %v917, %v924
      %v932 = vmul.f32 %v918, %v928
      %v933 = vpack.c.bf16 %v931, %v931
      %v934 = vpack.c.bf16 %v932, %v932
      %v937 = vunpack.c.l.b16 %v933
      %v938 = vunpack.c.l.b16 %v934
      %v939 = vpack.c.b16 %v938, %v937
      %941 = vst [vmem:[%s204] sm:$0xff] %v939
      %v942 = vadd.f32 %v931, %v932
      %943 = vadd.xlane.f32.xlu0 %v942
      %v944 = vpop.xlane.xlu0 %943
      %v945 = vmul.f32 %v931, %v931
      %v946 = vmul.f32 %v932, %v932
      %v947 = vadd.f32 %v945, %v946
      %948 = vadd.xlane.f32.xlu0 %v947
      %v949 = vpop.xlane.xlu0 %948
      %vm950 = vcmask 7168
      %v951 = vsel %vm950, %v944, %v949
      %vm952 = vcmask 15360
      %953 = vst.msk [vmem:[%s208] sm:$0xff] %vm952, %v951
      %p954 = scmp.lt.s32.totalorder %s16, 1
      %s955 = scalar_select %p954, %s16, 1
      %s956 = smul.addr %s955, 2
      %s957 = smul.addr %s956, 4
      %s958 = scalar_lea.vmem %s3, %s957
      %p959 = scmp.lt.s32.totalorder %s16, 1
      %s960 = scalar_select %p959, %s16, 1
      %s961 = smul.addr %s960, 8
      %s962 = scalar_lea.vmem %s4, %s961
      // Predicated region
      $region33: #{model_forward.1} parent=31 // pred_check
        %p963 = pneg %p102
      $region34: #{model_forward.1} parent=31 // pred_check_branch
        %965 = sbr.rel (%p963) target = $region36
      $region35: #{model_forward.1} parent=31 // pred_region
        _
      $region36: #{model_forward.1} parent=31 // pred_fallthru
        _
      // Predicated region
      $region37: #{model_forward.1} parent=31 // pred_check
        %p966 = pneg %p128
      $region38: #{model_forward.1} parent=31 // pred_check_branch
        %968 = sbr.rel (%p966) target = $region40
      $region39: #{model_forward.1} parent=31 // pred_region
        _
      $region40: #{model_forward.1} parent=31 // pred_fallthru
        _
    $region32: #{model_forward.1} parent=5 // pred_fallthru
      _
    %p969 = scmp.le.s32.totalorder 2, %s11
    // Predicated region
    $region41: #{model_forward.1} parent=5 // pred_check
      %p970 = pneg %p969
    $region42: #{model_forward.1} parent=5 // pred_check_branch
      %972 = sbr.rel (%p970) target = $region44
    $region43: #{model_forward.1} parent=5 // pred_region
      %s973 = ssub.s32 %s11, 2
      // Predicated region
      $region45: #{model_forward.1} parent=43 // pred_check
        %p974 = pneg %p108
      $region46: #{model_forward.1} parent=43 // pred_check_branch
        %976 = sbr.rel (%p974) target = $region48
      $region47: #{model_forward.1} parent=43 // pred_region
        %p977 = scmp.lt.s32.totalorder %s17, 1
        %s978 = scalar_select %p977, %s17, 1
        %s979 = smul.addr %s978, 2
        %s980 = smul.addr %s979, 4
        %s981 = scalar_lea.vmem %s3, %s980
      $region48: #{model_forward.1} parent=43 // pred_fallthru
        _
      // Predicated region
      $region49: #{model_forward.1} parent=43 // pred_check
        %p982 = pneg %p134
      $region50: #{model_forward.1} parent=43 // pred_check_branch
        %984 = sbr.rel (%p982) target = $region52
      $region51: #{model_forward.1} parent=43 // pred_region
        %p985 = scmp.lt.s32.totalorder %s17, 1
        %s986 = scalar_select %p985, %s17, 1
        %s987 = smul.addr %s986, 8
        %s988 = scalar_lea.vmem %s4, %s987
      $region52: #{model_forward.1} parent=43 // pred_fallthru
        _
    $region44: #{model_forward.1} parent=5 // pred_fallthru
      _
  $region6: #{model_forward.1} parent=0 // loop_footer
    %s15 = sadd.s32 1, %s11
  $region7: #{model_forward.1} parent=0 // loop_footer_branch
    %10 = sbr.rel target = $region3
  $region8: #{model_forward.1} parent=0 // loop_exit
    _

</llo_original>
